<compile_context>
chip_gen: v7x
topology: tpu7x:2x2x1
jax: 0.10.0
libtpu: 0.0.40
codegen_flags: <defaults>
</compile_context>

<pallas_src>
import jax
import jax.numpy as jnp
import numpy as np
from jax.experimental import pallas as pl
from jax.experimental.pallas import tpu as pltpu

BN_EPS = 1e-5

_ROW_TILE = 256              # sublane-dim tile target for (B*C, HW) view
_LANE_TILE = 2048            # lane-dim tile target (multiple of 128)
_TILED_VMEM_LIMIT = 32 * 1024 * 1024   # fits v5e/v6e/v7x scoped VMEM


def _round_up(a, m):
    return (a + m - 1) // m * m


def _vmem_capacity_bytes():
    try:
        return int(pltpu.get_tpu_info().vmem_capacity_bytes)
    except Exception:
        return 64 * 1024 * 1024   # conservative default (v7x per-TC VMEM)


# ----------------------------------------------------------------------------
# Kernels
# ----------------------------------------------------------------------------
def _resident_kernel(x_ref, w_ref, b_ref, o_ref):
    """Whole-x-in-VMEM path: pool + fused gate GEMV + channel gating in one kernel.

    x_ref: (B, C, HW);  w_ref: (C, C_out) with 1/(H*W) and BN scale folded in;
    b_ref: (1, C_out);  o_ref: (B, C, HW).
    """
    x = x_ref[...].astype(jnp.float32)
    pooled = jnp.sum(x, axis=-1)                                          # (B, C)
    y = jnp.dot(pooled, w_ref[...], preferred_element_type=jnp.float32)   # (B, C_out)
    gate = jnp.maximum(y + b_ref[...], 0.0)                               # BN+ReLU folded
    o_ref[...] = (x * gate[:, :, None]).astype(o_ref.dtype)


def _pool_kernel(x_ref, sum_ref, acc_ref):
    """Streaming spatial sum: VPU-accumulate per-tile, one XLU reduce at the end."""
    j = pl.program_id(1)

    @pl.when(j == 0)
    def _():
        acc_ref[...] = jnp.zeros_like(acc_ref)

    acc_ref[...] += x_ref[...].astype(jnp.float32)

    @pl.when(j == pl.num_programs(1) - 1)
    def _():
        sum_ref[...] = jnp.sum(acc_ref[...], axis=-1, keepdims=True)


def _gate_kernel(p_ref, w_ref, b_ref, o_ref):
    """gate = relu(pooled_sum @ W_eff + b_eff) — FC + 1x1 conv + BN folded."""
    y = jnp.dot(p_ref[...], w_ref[...], preferred_element_type=jnp.float32)
    o_ref[...] = jnp.maximum(y + b_ref[...], 0.0)


def _apply_kernel(x_ref, g_ref, o_ref):
    """Channel-wise gating, streamed over lane-dense 128-aligned tiles."""
    o_ref[...] = (x_ref[...].astype(jnp.float32) * g_ref[...]).astype(o_ref.dtype)


# ----------------------------------------------------------------------------
# Wrapper
# ----------------------------------------------------------------------------
def fcattention_pallas(x_nchw, w_fc, w_conv, gamma, beta, run_mean, run_var,
                       force_tiled=False):
    """x_nchw: (B, C, H, W); w_fc: (1000, C); w_conv: (C_out, 1000); BN params: (C_out,)."""
    b, c, h, w = x_nchw.shape
    c_out = w_conv.shape[0]
    assert c_out == c, "x * y.expand_as(x) requires out_channels == in_channels"

    hw = h * w
    f32 = jnp.float32

    # ---- fold FC + 1x1 conv + BN(inference) + 1/(H*W) into one (C, C_out) GEMV ----
    scale = gamma.astype(f32) * jax.lax.rsqrt(run_var.astype(f32) + BN_EPS)       # (C_out,)
    w_eff = (w_fc.T.astype(f32) @ w_conv.T.astype(f32)) * scale[None, :] / hw      # (C, C_out)
    b_eff = (beta.astype(f32) - run_mean.astype(f32) * scale).reshape(1, c_out)    # (1, C_out)

    vmem = pl.BlockSpec(memory_space=pltpu.MemorySpace.VMEM)
    x_bytes = int(x_nchw.size) * x_nchw.dtype.itemsize
    cap = _vmem_capacity_bytes()

    # -------------------------------------------------------------------------
    # Resident path: whole x fits in VMEM -> 1 HBM read + 1 HBM write of x.
    # -------------------------------------------------------------------------
    use_resident = (not force_tiled) and (2 * x_bytes + (4 << 20) <= int(0.6 * cap))
    if use_resident:
        vmem_limit = max(32 << 20, min(int(0.85 * cap), 2 * x_bytes + (16 << 20)))
        out = pl.pallas_call(
            _resident_kernel,
            out_shape=jax.ShapeDtypeStruct((b, c, hw), x_nchw.dtype),
            in_specs=[vmem, vmem, vmem],
            out_specs=vmem,
            compiler_params=pltpu.CompilerParams(vmem_limit_bytes=int(vmem_limit)),
        )(x_nchw.reshape(b, c, hw), w_eff, b_eff)
        return out.reshape(b, c, h, w)

    # -------------------------------------------------------------------------
    # Tiled streaming path: 2D (B*C, HW) layout, lane-dense 128-aligned tiles.
    # -------------------------------------------------------------------------
    r = b * c
    tr = min(_ROW_TILE, _round_up(r, 8))
    tl = min(_LANE_TILE, _round_up(hw, 128))
    rp = _round_up(r, tr)
    lp = _round_up(hw, tl)

    x2d = x_nchw.reshape(r, hw)
    if (rp != r) or (lp != hw):
        x2d = jnp.pad(x2d, ((0, rp - r), (0, lp - hw)))   # zero pad: sums unaffected

    # Pass 1: streaming spatial sums (reduction axis last, 'arbitrary').
    sums = pl.pallas_call(
        _pool_kernel,
        out_shape=jax.ShapeDtypeStruct((rp, 1), f32),
        grid_spec=pltpu.PrefetchScalarGridSpec(
            num_scalar_prefetch=0,
            grid=(rp // tr, lp // tl),
            in_specs=[pl.BlockSpec((tr, tl), lambda i, j: (i, j))],
            out_specs=pl.BlockSpec((tr, 1), lambda i, j: (i, 0)),
            scratch_shapes=[pltpu.VMEM((tr, tl), f32)],
        ),
        compiler_params=pltpu.CompilerParams(
            dimension_semantics=("parallel", "arbitrary"),
            vmem_limit_bytes=_TILED_VMEM_LIMIT),
    )(x2d)

    # Fused gate GEMV (tiny): relu(pooled_sum @ W_eff + b_eff).
    pooled = sums[:r, 0].reshape(b, c)
    gate = pl.pallas_call(
        _gate_kernel,
        out_shape=jax.ShapeDtypeStruct((b, c_out), f32),
        in_specs=[vmem, vmem, vmem],
        out_specs=vmem,
    )(pooled, w_eff, b_eff)

    gate_flat = gate.reshape(r, 1)
    if rp != r:
        gate_flat = jnp.pad(gate_flat, ((0, rp - r), (0, 0)))

    # Pass 2: stream x again and apply the per-(b, c) gate (both axes independent).
    out2d = pl.pallas_call(
        _apply_kernel,
        out_shape=jax.ShapeDtypeStruct((rp, lp), x_nchw.dtype),
        grid_spec=pltpu.PrefetchScalarGridSpec(
            num_scalar_prefetch=0,
            grid=(rp // tr, lp // tl),
            in_specs=[pl.BlockSpec((tr, tl), lambda i, j: (i, j)),
                      pl.BlockSpec((tr, 1), lambda i, j: (i, 0))],   # gate resident per row tile
            out_specs=pl.BlockSpec((tr, tl), lambda i, j: (i, j)),
        ),
        compiler_params=pltpu.CompilerParams(
            dimension_semantics=("parallel", "parallel"),
            vmem_limit_bytes=_TILED_VMEM_LIMIT),
    )(x2d, gate_flat)

    return out2d[:r, :hw].reshape(b, c, h, w)


def fcattention_ref(x, w_fc, w_conv, gamma, beta, run_mean, run_var):
    """Pure-JAX reference mirroring the PyTorch forward (BN inference)."""
    pooled = jnp.mean(x, axis=(2, 3))                       # (B, C)
    y = pooled @ w_fc.T                                     # (B, 1000)
    y = y @ w_conv.T                                        # (B, C_out)
    y = (y - run_mean) / jnp.sqrt(run_var + BN_EPS) * gamma + beta
    y = jnp.maximum(y, 0.0)
    return x * y[:, :, None, None]


if __name__ == "__main__":
    key = jax.random.PRNGKey(0)
    k_x, k_fc, k_conv, k_g, k_b, k_m, k_v = jax.random.split(key, 7)

    B, C, H, W = 2, 4, 16, 16      # in_channels = out_channels = 4
    HIDDEN = 1000

    x = jax.random.normal(k_x, (B, C, H, W), dtype=jnp.float32)
    # Linear(in_channels, 1000, bias=False): weight (1000, C)
    w_fc = jax.random.normal(k_fc, (HIDDEN, C), dtype=jnp.float32) * (1.0 / np.sqrt(C))
    # Conv2d(1000, out_channels, 1, bias=False): weight (C_out, 1000, 1, 1) -> (C_out, 1000)
    w_conv = jax.random.normal(k_conv, (C, HIDDEN), dtype=jnp.float32) * (1.0 / np.sqrt(HIDDEN))
    # BatchNorm2d params / running stats (deterministic synthetic values)
    gamma = 1.0 + 0.1 * jax.random.normal(k_g, (C,), dtype=jnp.float32)
    beta = 0.1 * jax.random.normal(k_b, (C,), dtype=jnp.float32)
    run_mean = 0.1 * jax.random.normal(k_m, (C,), dtype=jnp.float32)
    run_var = 1.0 + 0.1 * jax.random.uniform(k_v, (C,), dtype=jnp.float32)

    ref = fcattention_ref(x, w_fc, w_conv, gamma, beta, run_mean, run_var)

    # Resident (whole-x-in-VMEM) path — auto-selected for this small shape.
    out_res = jax.block_until_ready(
        fcattention_pallas(x, w_fc, w_conv, gamma, beta, run_mean, run_var))
    assert out_res.shape == (B, C, H, W)
    assert np.allclose(np.asarray(out_res), np.asarray(ref), rtol=1e-4, atol=1e-4)

    # Tiled streaming path — forced, to validate the large-activation code path.
    out_tiled = jax.block_until_ready(
        fcattention_pallas(x, w_fc, w_conv, gamma, beta, run_mean, run_var,
                           force_tiled=True))
    assert out_tiled.shape == (B, C, H, W)
    assert np.allclose(np.asarray(out_tiled), np.asarray(ref), rtol=1e-4, atol=1e-4)

    print("KERNEL_OK")
</pallas_src>

<mosaic_0001>
module attributes {stable_mosaic.version = 11 : i64} {
  func.func @_resident_kernel(%arg0: memref<2x4x256xf32, #tpu.memory_space<vmem>>, %arg1: memref<4x4xf32, #tpu.memory_space<vmem>>, %arg2: memref<1x4xf32, #tpu.memory_space<vmem>>, %arg3: memref<2x4x256xf32, #tpu.memory_space<vmem>>) attributes {dimension_semantics = [], scalar_prefetch = 0 : i64, scratch_operands = 0 : i64, tpu.core_type = #tpu.core_type<tc>} {
    %c0 = arith.constant 0 : index
    %c0_0 = arith.constant 0 : index
    %c0_1 = arith.constant 0 : index
    %0 = vector.load %arg0[%c0, %c0_0, %c0_1] : memref<2x4x256xf32, #tpu.memory_space<vmem>>, vector<2x4x256xf32>
    %cst = arith.constant dense<0.000000e+00> : vector<2x4xf32>
    %1 = vector.multi_reduction <add>, %0, %cst [2] : vector<2x4x256xf32> to vector<2x4xf32>
    %c0_2 = arith.constant 0 : index
    %c0_3 = arith.constant 0 : index
    %2 = vector.load %arg1[%c0_2, %c0_3] : memref<4x4xf32, #tpu.memory_space<vmem>>, vector<4x4xf32>
    %cst_4 = arith.constant dense<0.000000e+00> : vector<2x4xf32>
    %3 = tpu.matmul %1, %2, %cst_4 {dimension_numbers = #tpu.dot_dimension_numbers<[1], [0], [0], [1], [0, 0, 1, 1], [], []>} : vector<2x4xf32>, vector<4x4xf32>, vector<2x4xf32> -> vector<2x4xf32>
    %c0_5 = arith.constant 0 : index
    %c0_6 = arith.constant 0 : index
    %4 = vector.load %arg2[%c0_5, %c0_6] : memref<1x4xf32, #tpu.memory_space<vmem>>, vector<1x4xf32>
    %5 = vector.broadcast %4 : vector<1x4xf32> to vector<2x4xf32>
    %6 = arith.addf %3, %5 : vector<2x4xf32>
    %cst_7 = arith.constant 0.000000e+00 : f32
    %7 = vector.broadcast %cst_7 : f32 to vector<2x4xf32>
    %8 = arith.maximumf %6, %7 : vector<2x4xf32>
    %9 = vector.shape_cast %8 : vector<2x4xf32> to vector<2x4x1xf32>
    %10 = vector.broadcast %9 : vector<2x4x1xf32> to vector<2x4x256xf32>
    %11 = arith.mulf %0, %10 : vector<2x4x256xf32>
    %c0_8 = arith.constant 0 : index
    %c0_9 = arith.constant 0 : index
    %c0_10 = arith.constant 0 : index
    %12 = vector.load %arg3[%c0_8, %c0_9, %c0_10] : memref<2x4x256xf32, #tpu.memory_space<vmem>>, vector<2x4x256xf32>
    tpu.vector_store %arg3[%c0_8, %c0_9, %c0_10], %11 {strides = array<i32>} : memref<2x4x256xf32, #tpu.memory_space<vmem>>, vector<2x4x256xf32>,
    return
  }
}

</mosaic_0001>

<llo_original>
// kernel: tpu_custom_call.1
$region0: #{tpu_custom_call.1}
  #allocation0 [shape = 'u32[]', space=smem, size = 0x4, offset = 0x4, fixed_abs, tag = 'smem constant byte address 0x4 - core index']
  #allocation1 [shape = 'u32[144,128]{1,0:T(1,128)}', space=vmem, size = 0x12000, scoped, tag = 'internal scratch']
  %s0 = inlined_call_operand.hbm [shape: f32[2,4,256], index: 0, kind: input, shape index: {}]
  %s1 = inlined_call_operand.hbm [shape: f32[4,4], index: 1, kind: input, shape index: {}]
  %s2 = inlined_call_operand.vmem [shape: f32[1,4], index: 2, kind: input, shape index: {}]
  %s3 = inlined_call_operand.hbm [shape: f32[2,4,256], index: 3, kind: output, shape index: {}]
  %s4 = sld [smem:[#allocation0]]
  $region30: #{tpu_custom_call.1} parent=0
    _
  %s6 = ssub.s32 1, %s4
  %s7 = scalar_select 0, %s6, %s4
  $region1: #{tpu_custom_call.1} parent=0
    #allocation2 [shape = 'u8[8192]{0}', space=vmem, size = 0x2000, scoped, tag = 'input window, operand 0, single buffered']
    #allocation3 [shape = 's32[1]{0}', space=sflag, size = 0x4, scoped, tag = 'scoped memory for tpu_custom_call.1']
    #allocation4 [shape = 's32[1]{0}', space=sflag, size = 0x4, scoped, tag = 'scoped memory for tpu_custom_call.1']
    #allocation5 [shape = 'u8[2048]{0}', space=vmem, size = 0x800, scoped, tag = 'input window, operand 1, single buffered']
    #allocation6 [shape = 's32[1]{0}', space=sflag, size = 0x4, scoped, tag = 'scoped memory for tpu_custom_call.1']
    #allocation7 [shape = 'u8[8192]{0}', space=vmem, size = 0x2000, scoped, tag = 'output window, operand 0, single buffered']
    %8 = vsyncpa [#allocation3], 0
    %9 = vsyncpa [#allocation6], 0
    %10 = vsyncpa [#allocation4], 0
    // Predicated region
    $region2: #{tpu_custom_call.1} parent=1 // pred_check
      _
    $region3: #{tpu_custom_call.1} parent=1 // pred_check_branch
      %12 = sbr.rel (0) target = $region5
    $region4: #{tpu_custom_call.1} parent=1 // pred_region
      %s14 = ssub.s32 256, 256
      %15 = vsyncadd [#allocation3], %s14
      %s16 = sshll.u32 [#allocation2], 4
      %s17 = int_to_ptr.vmem [resolvable:$true] %s16
      %22 = dma.hbm_to_vmem [thread:$0]  %s0, 256, %s17, [#allocation3], 128, 128, 8
    $region5: #{tpu_custom_call.1} parent=1 // pred_fallthru
      _
    // Predicated region
    $region6: #{tpu_custom_call.1} parent=1 // pred_check
      _
    $region7: #{tpu_custom_call.1} parent=1 // pred_check_branch
      %24 = sbr.rel (0) target = $region9
    $region8: #{tpu_custom_call.1} parent=1 // pred_region
      %s26 = ssub.s32 64, 64
      %27 = vsyncadd [#allocation6], %s26
      %s29 = sshll.u32 [#allocation5], 4
      %s30 = int_to_ptr.vmem [resolvable:$true] %s29
      %32 = dma.hbm_to_vmem [thread:$0]  %s1, 64, %s30, [#allocation6]
    $region9: #{tpu_custom_call.1} parent=1 // pred_fallthru
      _
    // Predicated region
    $region10: #{tpu_custom_call.1} parent=1 // pred_check
      _
    $region11: #{tpu_custom_call.1} parent=1 // pred_check_branch
      %34 = sbr.rel (0) target = $region13
    $region12: #{tpu_custom_call.1} parent=1 // pred_region
      _
    $region13: #{tpu_custom_call.1} parent=1 // pred_fallthru
      _
    // Predicated region
    $region14: #{tpu_custom_call.1} parent=1 // pred_check
      _
    $region15: #{tpu_custom_call.1} parent=1 // pred_check_branch
      %36 = sbr.rel (0) target = $region17
    $region16: #{tpu_custom_call.1} parent=1 // pred_region
      %37 = dma.done [#allocation3], 256
    $region17: #{tpu_custom_call.1} parent=1 // pred_fallthru
      _
    // Predicated region
    $region18: #{tpu_custom_call.1} parent=1 // pred_check
      _
    $region19: #{tpu_custom_call.1} parent=1 // pred_check_branch
      %39 = sbr.rel (0) target = $region21
    $region20: #{tpu_custom_call.1} parent=1 // pred_region
      %40 = dma.done [#allocation6], 64
    $region21: #{tpu_custom_call.1} parent=1 // pred_fallthru
      _
    %v41 = vld [vmem:[#allocation2] sm:$0xff]
    %v42 = vld [vmem:[#allocation2 + $0x8] sm:$0xff]
    %v45 = vcombine.high %v41, %v41
    %v46 = vcombine.high %v42, %v42
    %vm49 = vcmask 1043456
    %v50 = vsel %vm49, %v41, 0.0
    %v51 = vsel %vm49, %v45, 0.0
    %v52 = vadd.f32 %v50, %v51
    %53 = vadd.xlane.f32.xlu0 %v52
    %v54 = vpop.xlane.xlu0 %53
    %v55 = vsel %vm49, %v42, 0.0
    %v56 = vsel %vm49, %v46, 0.0
    %v57 = vadd.f32 %v55, %v56
    %58 = vadd.xlane.f32.xlu0 %v57
    %v59 = vpop.xlane.xlu0 %58
    %v60 = vld [vmem:[#allocation5] sm:$0xf]
    %v61 = vld [vmem:[%s2] sm:$0x1]
    %v63 = vlaneseq
    %v64 = vshrl.u32 %v63, 7
    %v65 = vsub.s32 0, %v64
    %v66 = vrot.slane %v61, %v65
    %v70 = vlaneseq
    %v71 = vand.u32 %v70, 127
    %v72 = vlaneseq
    %v73 = vshrl.u32 %v72, 7
    %v74 = vsub.s32 %v71, %v73
    %v75 = vrot.slane %v54, %v74
    %v76 = vlaneseq
    %v77 = vshrl.u32 %v76, 7
    %v78 = vsub.s32 %v71, %v77
    %v79 = vrot.slane %v59, %v78
    %vm80 = vcmask 1041409
    %v81 = vsel %vm80, %v79, %v75
    %vm82 = vcmask 31744
    %v83 = vsel %vm82, %v81, 0
    %v86 = vsel %vm49, %v60, 0
    %88 = vmatprep.subr.mxu0 0.0
    %89 = vmatpush1.msra.mxu0 %v86
    %90 = vmatprep.subr.mxu0 0.0
    %91 = vmatpush1.msra.mxu0 0.0
    %92 = vmatprep.subr.mxu0 0.0
    %93 = vmatpush1.msra.mxu0 0.0
    %94 = vmatprep.subr.mxu0 0.0
    %95 = vmatpush1.msra.mxu0 0.0
    %96 = vmatprep.subr.mxu0 0.0
    %97 = vmatpush1.msra.mxu0 0.0
    %98 = vmatprep.subr.mxu0 0.0
    %99 = vmatpush1.msra.mxu0 0.0
    %100 = vmatprep.subr.mxu0 0.0
    %101 = vmatpush1.msra.mxu0 0.0
    %102 = vmatprep.subr.mxu0 0.0
    %103 = vmatpush1.msra.mxu0 0.0
    %104 = vmatprep.subr.mxu0 0.0
    %105 = vmatpush1.msra.mxu0 0.0
    %106 = vmatprep.subr.mxu0 0.0
    %107 = vmatpush1.msra.mxu0 0.0
    %108 = vmatprep.subr.mxu0 0.0
    %109 = vmatpush1.msra.mxu0 0.0
    %110 = vmatprep.subr.mxu0 0.0
    %111 = vmatpush1.msra.mxu0 0.0
    %112 = vmatprep.subr.mxu0 0.0
    %113 = vmatpush1.msra.mxu0 0.0
    %114 = vmatprep.subr.mxu0 0.0
    %115 = vmatpush1.msra.mxu0 0.0
    %116 = vmatprep.subr.mxu0 0.0
    %117 = vmatpush1.msra.mxu0 0.0
    %118 = vmatprep.subr.mxu0 0.0
    %119 = vmatpush1.msra.mxu0 0.0
    %120 = vmatprep.subr.mxu0 0.0
    %121 = vmatpush1.msra.mxu0 0.0
    %122 = vmatprep.subr.mxu0 0.0
    %123 = vmatpush1.msra.mxu0 0.0
    %124 = vmatprep.subr.mxu0 0.0
    %125 = vmatpush1.msra.mxu0 0.0
    %126 = vmatprep.subr.mxu0 0.0
    %127 = vmatpush1.msra.mxu0 0.0
    %128 = vmatprep.subr.mxu0 0.0
    %129 = vmatpush1.msra.mxu0 0.0
    %130 = vmatprep.subr.mxu0 0.0
    %131 = vmatpush1.msra.mxu0 0.0
    %132 = vmatprep.subr.mxu0 0.0
    %133 = vmatpush1.msra.mxu0 0.0
    %134 = vmatprep.subr.mxu0 0.0
    %135 = vmatpush1.msra.mxu0 0.0
    %136 = vmatprep.subr.mxu0 0.0
    %137 = vmatpush1.msra.mxu0 0.0
    %138 = vmatprep.subr.mxu0 0.0
    %139 = vmatpush1.msra.mxu0 0.0
    %140 = vmatprep.subr.mxu0 0.0
    %141 = vmatpush1.msra.mxu0 0.0
    %142 = vmatprep.subr.mxu0 0.0
    %143 = vmatpush1.msra.mxu0 0.0
    %144 = vmatprep.subr.mxu0 0.0
    %145 = vmatpush1.msra.mxu0 0.0
    %146 = vmatprep.subr.mxu0 0.0
    %147 = vmatpush1.msra.mxu0 0.0
    %148 = vmatprep.subr.mxu0 0.0
    %149 = vmatpush1.msra.mxu0 0.0
    %150 = vmatprep.subr.mxu0 0.0
    %151 = vmatpush1.msra.mxu0 0.0
    %152 = vmatprep.mubr.f32.mxu0 0.0
    %153 = vmatmul.mubr.f32.gmra.mrb[0].mxu0 %v83
    %v154 = vpop.f32.mrb[0].mxu0
    %v155 = vadd.f32 %v66, %v154
    %v156 = vpop.f32.mrb[0].mxu0
    %157 = vdwg.mxu0
    %v158 = vmax.f32 %v155, 0.0
    %v159 = vlaneseq
    %v160 = vshrl.u32 %v159, 7
    %v161 = vsub.s32 0, %v160
    %v162 = vrot.slane %v158, %v161
    %164 = vbcast.lane.b32.xlu0 %v162, 256
    %v165 = vpop.permute.xlu0 %164
    %v166 = vlaneseq
    %v167 = vshrl.u32 %v166, 7
    %v168 = vsub.s32 1, %v167
    %v169 = vrot.slane %v158, %v168
    %171 = vbcast.lane.b32.xlu0 %v169, 256
    %v172 = vpop.permute.xlu0 %171
    %v176 = vunpack.c.l.s4 839922192
    %v177 = vunpack.c.0.s8 %v176
    %v178 = vlaneseq
    %v179 = vshrl.u32 %v178, 7
    %v180 = vsub.s32 %v177, %v179
    %v181 = vrot.slane %v165, %v180
    %v183 = vunpack.c.l.s4 839922192
    %v184 = vunpack.c.0.s8 %v183
    %v185 = vlaneseq
    %v186 = vshrl.u32 %v185, 7
    %v187 = vsub.s32 %v184, %v186
    %v188 = vrot.slane %v172, %v187
    %v191 = vmul.f32 %v41, %v181
    %v192 = vmul.f32 %v42, %v188
    %193 = vst [vmem:[#allocation7] sm:$0xff] %v191
    %194 = vst [vmem:[#allocation7 + $0x8] sm:$0xff] %v192
    // Predicated region
    $region22: #{tpu_custom_call.1} parent=1 // pred_check
      _
    $region23: #{tpu_custom_call.1} parent=1 // pred_check_branch
      %196 = sbr.rel (0) target = $region25
    $region24: #{tpu_custom_call.1} parent=1 // pred_region
      %s198 = ssub.s32 256, 256
      %199 = vsyncadd [#allocation4], %s198
      %s200 = sshll.u32 [#allocation7], 4
      %s201 = int_to_ptr.vmem [resolvable:$true] %s200
      %206 = dma.vmem_to_hbm [thread:$0]  %s201, 256, %s3, [#allocation4], 128, 128, 8
    $region25: #{tpu_custom_call.1} parent=1 // pred_fallthru
      _
    // Predicated region
    $region26: #{tpu_custom_call.1} parent=1 // pred_check
      _
    $region27: #{tpu_custom_call.1} parent=1 // pred_check_branch
      %208 = sbr.rel (0) target = $region29
    $region28: #{tpu_custom_call.1} parent=1 // pred_region
      %209 = dma.done [#allocation4], 256
    $region29: #{tpu_custom_call.1} parent=1 // pred_fallthru
      _
    %210 = vsyncpa [#allocation3], 1
    %211 = vsyncpa [#allocation6], 1
    %212 = vsyncpa [#allocation4], 1

</llo_original>
